<compile_context>
chip_gen: v6e
topology: v6e:2x2x1
jax: 0.10.0
libtpu: 0.0.40
codegen_flags: <defaults>
</compile_context>

<pallas_src>
import math

import jax
import jax.numpy as jnp
from jax.experimental import pallas as pl
from jax.experimental.pallas import tpu as pltpu

_INV_LN2 = 1.0 / math.log(2.0)
_TEMP_F32_PER_ELEM = 8          # m, x, y, log_x, log_1mx, bce/kl elems (overlapping liveness)


def _round_up(x, m):
    return ((x + m - 1) // m) * m


def _make_kernel(B, N, tb, tc):
    def kernel(pred_ref, label_ref, mu_ref, std_ref, mv_ref, ml_ref,
               bce_out_ref, kl_out_ref):
        """Per-tile partial sums for the BCE and KL terms.

        Each (row-tile, col-tile) grid step is independent ("parallel" axes):
        it reduces its (tb, tc) tile to an (8, tc) sublane/lane partial using
        only VPU adds and writes it to its own lane-dense output block.  Rows /
        cols beyond the true (B, N) extent (cdiv grid, no input padding) are
        zeroed with a validity mask *after* the logs so any garbage (even NaN)
        in the out-of-bounds region of a partial block cannot leak through.
        """
        row0 = pl.program_id(0) * tb
        col0 = pl.program_id(1) * tc
        rows = jax.lax.broadcasted_iota(jnp.int32, (tb, tc), 0) + row0
        cols = jax.lax.broadcasted_iota(jnp.int32, (tb, tc), 1) + col0
        valid = (rows < B) & (cols < N)

        mv = mv_ref[...].astype(jnp.float32)
        m = mv * ml_ref[...].astype(jnp.float32)          # combined mask, once

        # ---- BCE part: bce(pred*m, label*m); PyTorch BCELoss clamps log at -100 ----
        x = pred_ref[...].astype(jnp.float32) * m
        y = label_ref[...].astype(jnp.float32) * m
        log_x = jnp.maximum(jnp.log(x), jnp.float32(-100.0))
        log_1mx = jnp.maximum(jnp.log(1.0 - x), jnp.float32(-100.0))
        bce_elem = jnp.where(valid, -(y * log_x + (1.0 - y) * log_1mx), 0.0)

        # ---- KL (info) part: (1 + 2*log(std) - mu^2 - std^2) * mask_v ----
        mu = mu_ref[...].astype(jnp.float32)
        std = std_ref[...].astype(jnp.float32)
        kl_elem = jnp.where(
            valid, (1.0 + 2.0 * jnp.log(std) - mu * mu - std * std) * mv, 0.0)

        # VPU-only partial reduction: fold the row axis in groups of 8 sublanes.
        bce_out_ref[...] = jnp.sum(bce_elem.reshape(tb // 8, 8, tc), axis=0)
        kl_out_ref[...] = jnp.sum(kl_elem.reshape(tb // 8, 8, tc), axis=0)

    return kernel


def _default_vmem_budget_bytes():
    """Per-grid-step working-set budget (double-buffered inputs + f32 temps)."""
    try:
        kind = jax.devices()[0].device_kind.lower()
    except Exception:
        kind = ""
    if "v5" in kind or "v6" in kind:
        return 64 << 20          # 128 MiB physical VMEM: use big blocks
    return 30 << 20              # v7x (64 MiB physical) / unknown: conservative


def _choose_tiles(B, N, itemsizes, vmem_budget_bytes):
    """Pick (row_tile, col_tile).  Row tile is a multiple of the sublane packing
    multiple (8 f32 / 16 bf16 / 32 int8); col tile is the full feature width, or
    a multiple of 128 when N is too wide for the VMEM budget."""
    sub = 8 * max(1, 4 // max(1, min(itemsizes)))
    per_elem = 2 * sum(itemsizes) + 4 * _TEMP_F32_PER_ELEM
    max_elems = max(vmem_budget_bytes // per_elem, sub * 128)
    if N <= 128 or N * sub <= max_elems:
        tc = N                                           # stream full-width rows
    else:
        tc = min(N, max(128, (max_elems // sub) // 128 * 128))
    tb = max(sub, (max_elems // tc) // sub * sub)
    tb = min(tb, _round_up(B, sub))
    return tb, tc


def loss_first_stage(pred, label, mu, std, mask_v, mask_l, *, beta=0.001,
                     vmem_budget_bytes=None, row_tile=None, col_tile=None):
    """Pallas implementation of LossFirstStage.forward.  All inputs are (B, N).

    Inputs may be f32 / bf16 (masks also bool / int8); everything is upcast to
    f32 inside the kernel, so the HBM-bound kernel benefits 1:1 from narrower
    input dtypes.
    """
    B, N = pred.shape
    inputs = (pred, label, mu, std, mask_v, mask_l)
    itemsizes = [jnp.dtype(a.dtype).itemsize for a in inputs]

    if vmem_budget_bytes is None:
        vmem_budget_bytes = _default_vmem_budget_bytes()
    tb, tc = _choose_tiles(B, N, itemsizes, vmem_budget_bytes)
    if row_tile is not None:
        tb = row_tile
    if col_tile is not None:
        tc = col_tile
    assert tb % 8 == 0, "row tile must be a multiple of 8"
    assert tc == N or tc % 128 == 0, "col tile must equal N or be a multiple of 128"

    n_row_tiles = pl.cdiv(B, tb)
    n_col_tiles = pl.cdiv(N, tc)

    in_spec = pl.BlockSpec((tb, tc), lambda i, j: (i, j))
    out_spec = pl.BlockSpec((8, tc), lambda i, j: (i, j))
    part_shape = jax.ShapeDtypeStruct((n_row_tiles * 8, n_col_tiles * tc),
                                      jnp.float32)

    # VMEM sizing: double-buffered input blocks + in-kernel f32 temporaries +
    # the two double-buffered partial-output blocks, plus headroom.  Cap below
    # v7x's 64 MiB physical VMEM on the conservative path; v5e/v6e (128 MiB)
    # may use the larger budget selected above.
    block_elems = tb * tc
    vmem_need = (2 * block_elems * sum(itemsizes)
                 + 4 * _TEMP_F32_PER_ELEM * block_elems
                 + 2 * 2 * 8 * tc * 4)
    vmem_limit = int(min(max(vmem_need + (12 << 20), 32 << 20), 110 << 20))

    in_bytes = sum(B * N * s for s in itemsizes)
    out_bytes = 2 * n_row_tiles * 8 * n_col_tiles * tc * 4
    cost = pl.CostEstimate(flops=20 * B * N, transcendentals=3 * B * N,
                           bytes_accessed=in_bytes + out_bytes)

    bce_part, kl_part = pl.pallas_call(
        _make_kernel(B, N, tb, tc),
        out_shape=(part_shape, part_shape),
        grid_spec=pltpu.PrefetchScalarGridSpec(
            num_scalar_prefetch=0,
            grid=(n_row_tiles, n_col_tiles),
            in_specs=[in_spec] * 6,
            out_specs=(out_spec, out_spec),
        ),
        compiler_params=pltpu.CompilerParams(
            dimension_semantics=("parallel", "parallel"),   # megacore-shardable
            vmem_limit_bytes=vmem_limit,
        ),
        cost_estimate=cost,
    )(pred, label, mu, std, mask_v, mask_l)

    # Tiny final reduce + scaling in plain JAX; the 1/(B*N)/ln2 constant is
    # computed in double precision and rounded to f32 exactly once.
    scale = jnp.float32(_INV_LN2 / (B * N))
    class_loss = jnp.sum(bce_part) * scale
    info_loss = -0.5 * jnp.sum(kl_part) * scale
    return class_loss + jnp.float32(beta) * info_loss


def _reference(pred, label, mu, std, mask_v, mask_l, beta=0.001):
    """Pure-JAX reference matching torch.nn.BCELoss semantics."""
    x = pred * mask_v * mask_l
    y = label * mask_v * mask_l
    log_x = jnp.maximum(jnp.log(x), -100.0)
    log_1mx = jnp.maximum(jnp.log(1.0 - x), -100.0)
    class_loss = jnp.mean(-(y * log_x + (1.0 - y) * log_1mx)) / math.log(2)
    info_loss = -0.5 * jnp.mean(
        (1.0 + 2.0 * jnp.log(std) - mu ** 2 - std ** 2) * mask_v) / math.log(2)
    return class_loss + beta * info_loss


if __name__ == "__main__":
    key = jax.random.PRNGKey(0)
    k1, k2, k3, k4, k5, k6 = jax.random.split(key, 6)

    B, N = 40, 256  # small shapes; pred/label/mu/std/masks all share (B, N)

    pred = jax.nn.sigmoid(jax.random.normal(k1, (B, N), jnp.float32))
    label = jax.random.bernoulli(k2, 0.5, (B, N)).astype(jnp.float32)
    mu = 0.5 * jax.random.normal(k3, (B, N), jnp.float32)
    std = jax.nn.softplus(jax.random.normal(k4, (B, N), jnp.float32)) + 1e-3
    mask_v = jax.random.bernoulli(k5, 0.7, (B, N)).astype(jnp.float32)
    mask_l = jax.random.bernoulli(k6, 0.7, (B, N)).astype(jnp.float32)

    ref = _reference(pred, label, mu, std, mask_v, mask_l, beta=0.001)

    # 1) default tiling (single full-array tile here).
    loss = loss_first_stage(pred, label, mu, std, mask_v, mask_l, beta=0.001)
    loss = jax.block_until_ready(loss)
    assert jnp.allclose(loss, ref, rtol=1e-5, atol=1e-5), (loss, ref)

    # 2) forced small tiles: exercises the cdiv grid, in-kernel row masking
    #    (B=40 not a multiple of 16) and feature-axis chunking (2 col tiles).
    loss_tiled = loss_first_stage(pred, label, mu, std, mask_v, mask_l,
                                  beta=0.001, row_tile=16, col_tile=128)
    loss_tiled = jax.block_until_ready(loss_tiled)
    assert jnp.allclose(loss_tiled, ref, rtol=1e-5, atol=1e-5), (loss_tiled, ref)

    print("KERNEL_OK")
</pallas_src>

<mosaic_0001>
module attributes {stable_mosaic.version = 11 : i64} {
  func.func @kernel(%arg0: i32, %arg1: i32, %arg2: memref<40x256xf32, #tpu.memory_space<vmem>>, %arg3: memref<40x256xf32, #tpu.memory_space<vmem>>, %arg4: memref<40x256xf32, #tpu.memory_space<vmem>>, %arg5: memref<40x256xf32, #tpu.memory_space<vmem>>, %arg6: memref<40x256xf32, #tpu.memory_space<vmem>>, %arg7: memref<40x256xf32, #tpu.memory_space<vmem>>, %arg8: memref<8x256xf32, #tpu.memory_space<vmem>>, %arg9: memref<8x256xf32, #tpu.memory_space<vmem>>) attributes {dimension_semantics = [#tpu.dimension_semantics<parallel>, #tpu.dimension_semantics<parallel>], iteration_bounds = array<i64: 1, 1>, scalar_prefetch = 0 : i64, scratch_operands = 0 : i64, tpu.core_type = #tpu.core_type<tc>, window_params = [{transform_indices = @transform_0, window_bounds = array<i64: 40, 256>}, {transform_indices = @transform_1, window_bounds = array<i64: 40, 256>}, {transform_indices = @transform_2, window_bounds = array<i64: 40, 256>}, {transform_indices = @transform_3, window_bounds = array<i64: 40, 256>}, {transform_indices = @transform_4, window_bounds = array<i64: 40, 256>}, {transform_indices = @transform_5, window_bounds = array<i64: 40, 256>}, {transform_indices = @transform_6, window_bounds = array<i64: 8, 256>}, {transform_indices = @transform_7, window_bounds = array<i64: 8, 256>}]} {
    %c40_i32 = arith.constant 40 : i32
    %0 = arith.muli %arg0, %c40_i32 : i32
    %c256_i32 = arith.constant 256 : i32
    %1 = arith.muli %arg1, %c256_i32 : i32
    %2 = tpu.iota {dimensions = array<i32: 0>} : vector<40x256xi32>
    %3 = vector.broadcast %0 : i32 to vector<40x256xi32>
    %4 = arith.addi %2, %3 : vector<40x256xi32>
    %5 = tpu.iota {dimensions = array<i32: 1>} : vector<40x256xi32>
    %6 = vector.broadcast %1 : i32 to vector<40x256xi32>
    %7 = arith.addi %5, %6 : vector<40x256xi32>
    %c40_i32_0 = arith.constant 40 : i32
    %8 = vector.broadcast %c40_i32_0 : i32 to vector<40x256xi32>
    %9 = arith.cmpi slt, %4, %8 : vector<40x256xi32>
    %c256_i32_1 = arith.constant 256 : i32
    %10 = vector.broadcast %c256_i32_1 : i32 to vector<40x256xi32>
    %11 = arith.cmpi slt, %7, %10 : vector<40x256xi32>
    %12 = arith.andi %9, %11 : vector<40x256xi1>
    %c0 = arith.constant 0 : index
    %c0_2 = arith.constant 0 : index
    %13 = vector.load %arg6[%c0, %c0_2] : memref<40x256xf32, #tpu.memory_space<vmem>>, vector<40x256xf32>
    %c0_3 = arith.constant 0 : index
    %c0_4 = arith.constant 0 : index
    %14 = vector.load %arg7[%c0_3, %c0_4] : memref<40x256xf32, #tpu.memory_space<vmem>>, vector<40x256xf32>
    %15 = arith.mulf %13, %14 : vector<40x256xf32>
    %c0_5 = arith.constant 0 : index
    %c0_6 = arith.constant 0 : index
    %16 = vector.load %arg2[%c0_5, %c0_6] : memref<40x256xf32, #tpu.memory_space<vmem>>, vector<40x256xf32>
    %17 = arith.mulf %16, %15 : vector<40x256xf32>
    %c0_7 = arith.constant 0 : index
    %c0_8 = arith.constant 0 : index
    %18 = vector.load %arg3[%c0_7, %c0_8] : memref<40x256xf32, #tpu.memory_space<vmem>>, vector<40x256xf32>
    %19 = arith.mulf %18, %15 : vector<40x256xf32>
    %20 = math.log %17 : vector<40x256xf32>
    %cst = arith.constant -1.000000e+02 : f32
    %21 = vector.broadcast %cst : f32 to vector<40x256xf32>
    %22 = arith.maximumf %20, %21 : vector<40x256xf32>
    %cst_9 = arith.constant 1.000000e+00 : f32
    %23 = vector.broadcast %cst_9 : f32 to vector<40x256xf32>
    %24 = arith.subf %23, %17 : vector<40x256xf32>
    %25 = math.log %24 : vector<40x256xf32>
    %cst_10 = arith.constant -1.000000e+02 : f32
    %26 = vector.broadcast %cst_10 : f32 to vector<40x256xf32>
    %27 = arith.maximumf %25, %26 : vector<40x256xf32>
    %28 = arith.mulf %19, %22 : vector<40x256xf32>
    %cst_11 = arith.constant 1.000000e+00 : f32
    %29 = vector.broadcast %cst_11 : f32 to vector<40x256xf32>
    %30 = arith.subf %29, %19 : vector<40x256xf32>
    %31 = arith.mulf %30, %27 : vector<40x256xf32>
    %32 = arith.addf %28, %31 : vector<40x256xf32>
    %cst_12 = arith.constant 0.000000e+00 : f32
    %33 = vector.broadcast %cst_12 : f32 to vector<40x256xf32>
    %34 = arith.subf %33, %32 : vector<40x256xf32>
    %cst_13 = arith.constant 0.000000e+00 : f32
    %35 = vector.broadcast %cst_13 : f32 to vector<40x256xf32>
    %36 = arith.select %12, %34, %35 : vector<40x256xi1>, vector<40x256xf32>
    %c0_14 = arith.constant 0 : index
    %c0_15 = arith.constant 0 : index
    %37 = vector.load %arg4[%c0_14, %c0_15] : memref<40x256xf32, #tpu.memory_space<vmem>>, vector<40x256xf32>
    %c0_16 = arith.constant 0 : index
    %c0_17 = arith.constant 0 : index
    %38 = vector.load %arg5[%c0_16, %c0_17] : memref<40x256xf32, #tpu.memory_space<vmem>>, vector<40x256xf32>
    %39 = math.log %38 : vector<40x256xf32>
    %cst_18 = arith.constant 2.000000e+00 : f32
    %40 = vector.broadcast %cst_18 : f32 to vector<40x256xf32>
    %41 = arith.mulf %40, %39 : vector<40x256xf32>
    %cst_19 = arith.constant 1.000000e+00 : f32
    %42 = vector.broadcast %cst_19 : f32 to vector<40x256xf32>
    %43 = arith.addf %42, %41 : vector<40x256xf32>
    %44 = arith.mulf %37, %37 : vector<40x256xf32>
    %45 = arith.subf %43, %44 : vector<40x256xf32>
    %46 = arith.mulf %38, %38 : vector<40x256xf32>
    %47 = arith.subf %45, %46 : vector<40x256xf32>
    %48 = arith.mulf %47, %13 : vector<40x256xf32>
    %cst_20 = arith.constant 0.000000e+00 : f32
    %49 = vector.broadcast %cst_20 : f32 to vector<40x256xf32>
    %50 = arith.select %12, %48, %49 : vector<40x256xi1>, vector<40x256xf32>
    %51 = vector.shape_cast %36 : vector<40x256xf32> to vector<5x8x256xf32>
    %cst_21 = arith.constant dense<0.000000e+00> : vector<8x256xf32>
    %52 = vector.multi_reduction <add>, %51, %cst_21 [0] : vector<5x8x256xf32> to vector<8x256xf32>
    %c0_22 = arith.constant 0 : index
    %c0_23 = arith.constant 0 : index
    %53 = vector.load %arg8[%c0_22, %c0_23] : memref<8x256xf32, #tpu.memory_space<vmem>>, vector<8x256xf32>
    tpu.vector_store %arg8[%c0_22, %c0_23], %52 {strides = array<i32>} : memref<8x256xf32, #tpu.memory_space<vmem>>, vector<8x256xf32>,
    %54 = vector.shape_cast %50 : vector<40x256xf32> to vector<5x8x256xf32>
    %cst_24 = arith.constant dense<0.000000e+00> : vector<8x256xf32>
    %55 = vector.multi_reduction <add>, %54, %cst_24 [0] : vector<5x8x256xf32> to vector<8x256xf32>
    %c0_25 = arith.constant 0 : index
    %c0_26 = arith.constant 0 : index
    %56 = vector.load %arg9[%c0_25, %c0_26] : memref<8x256xf32, #tpu.memory_space<vmem>>, vector<8x256xf32>
    tpu.vector_store %arg9[%c0_25, %c0_26], %55 {strides = array<i32>} : memref<8x256xf32, #tpu.memory_space<vmem>>, vector<8x256xf32>,
    return
  }
  func.func @transform_0(%arg0: i32, %arg1: i32) -> (i32, i32) {
    %c0_i32 = arith.constant 0 : i32
    return %arg0, %arg1 : i32, i32
  }
  func.func @transform_1(%arg0: i32, %arg1: i32) -> (i32, i32) {
    %c0_i32 = arith.constant 0 : i32
    return %arg0, %arg1 : i32, i32
  }
  func.func @transform_2(%arg0: i32, %arg1: i32) -> (i32, i32) {
    %c0_i32 = arith.constant 0 : i32
    return %arg0, %arg1 : i32, i32
  }
  func.func @transform_3(%arg0: i32, %arg1: i32) -> (i32, i32) {
    %c0_i32 = arith.constant 0 : i32
    return %arg0, %arg1 : i32, i32
  }
  func.func @transform_4(%arg0: i32, %arg1: i32) -> (i32, i32) {
    %c0_i32 = arith.constant 0 : i32
    return %arg0, %arg1 : i32, i32
  }
  func.func @transform_5(%arg0: i32, %arg1: i32) -> (i32, i32) {
    %c0_i32 = arith.constant 0 : i32
    return %arg0, %arg1 : i32, i32
  }
  func.func @transform_6(%arg0: i32, %arg1: i32) -> (i32, i32) {
    %c0_i32 = arith.constant 0 : i32
    return %arg0, %arg1 : i32, i32
  }
  func.func @transform_7(%arg0: i32, %arg1: i32) -> (i32, i32) {
    %c0_i32 = arith.constant 0 : i32
    return %arg0, %arg1 : i32, i32
  }
}

</mosaic_0001>

<llo_original>
// kernel: tpu_custom_call.1
$region0: #{tpu_custom_call.1}
  #allocation0 [shape = 'u32[]', space=smem, size = 0x4, offset = 0x4, fixed_abs, tag = 'smem constant byte address 0x4 - core index']
  #allocation1 [shape = 'u32[144,128]{1,0:T(1,128)}', space=vmem, size = 0x12000, scoped, tag = 'internal scratch']
  %s0 = inlined_call_operand.hbm [shape: f32[40,256], index: 0, kind: input, shape index: {}]
  %s1 = inlined_call_operand.hbm [shape: f32[40,256], index: 1, kind: input, shape index: {}]
  %s2 = inlined_call_operand.hbm [shape: f32[40,256], index: 2, kind: input, shape index: {}]
  %s3 = inlined_call_operand.hbm [shape: f32[40,256], index: 3, kind: input, shape index: {}]
  %s4 = inlined_call_operand.hbm [shape: f32[40,256], index: 4, kind: input, shape index: {}]
  %s5 = inlined_call_operand.hbm [shape: f32[40,256], index: 5, kind: input, shape index: {}]
  %s6 = inlined_call_operand.hbm [shape: f32[8,256], index: 6, kind: output, shape index: {0}]
  %s7 = inlined_call_operand.hbm [shape: f32[8,256], index: 7, kind: output, shape index: {1}]
  %8 = xla_tuple %s6, %s7
  %s9 = sld [smem:[#allocation0]]
  $region66: #{tpu_custom_call.1} parent=0
    _
  %s11 = ssub.s32 1, %s9
  %s12 = scalar_select 0, %s11, %s9
  $region1: #{tpu_custom_call.1} parent=0
    #allocation2 [shape = 'u8[40960]{0}', space=vmem, size = 0xa000, scoped, tag = 'input window, operand 0, single buffered']
    #allocation3 [shape = 's32[1]{0}', space=sflag, size = 0x4, scoped, tag = 'scoped memory for tpu_custom_call.1']
    #allocation4 [shape = 's32[1]{0}', space=sflag, size = 0x4, scoped, tag = 'scoped memory for tpu_custom_call.1']
    #allocation5 [shape = 'u8[40960]{0}', space=vmem, size = 0xa000, scoped, tag = 'input window, operand 1, single buffered']
    #allocation6 [shape = 's32[1]{0}', space=sflag, size = 0x4, scoped, tag = 'scoped memory for tpu_custom_call.1']
    #allocation7 [shape = 'u8[40960]{0}', space=vmem, size = 0xa000, scoped, tag = 'input window, operand 2, single buffered']
    #allocation8 [shape = 'u8[40960]{0}', space=vmem, size = 0xa000, scoped, tag = 'input window, operand 3, single buffered']
    #allocation9 [shape = 's32[1]{0}', space=sflag, size = 0x4, scoped, tag = 'scoped memory for tpu_custom_call.1']
    #allocation10 [shape = 'u8[40960]{0}', space=vmem, size = 0xa000, scoped, tag = 'input window, operand 4, single buffered']
    #allocation11 [shape = 'u8[40960]{0}', space=vmem, size = 0xa000, scoped, tag = 'input window, operand 5, single buffered']
    #allocation12 [shape = 's32[1]{0}', space=sflag, size = 0x4, scoped, tag = 'scoped memory for tpu_custom_call.1']
    #allocation13 [shape = 'u8[8192]{0}', space=vmem, size = 0x2000, scoped, tag = 'output window, operand 0, single buffered']
    #allocation14 [shape = 'u8[8192]{0}', space=vmem, size = 0x2000, scoped, tag = 'output window, operand 1, single buffered']
    #allocation15 [shape = 's32[1]{0}', space=sflag, size = 0x4, scoped, tag = 'scoped memory for tpu_custom_call.1']
    %13 = vsyncpa [#allocation3], 0
    %14 = vsyncpa [#allocation6], 0
    %15 = vsyncpa [#allocation9], 0
    %16 = vsyncpa [#allocation12], 0
    %17 = vsyncpa [#allocation4], 0
    %18 = vsyncpa [#allocation15], 0
    // Predicated region
    $region2: #{tpu_custom_call.1} parent=1 // pred_check
      _
    $region3: #{tpu_custom_call.1} parent=1 // pred_check_branch
      %20 = sbr.rel (0) target = $region5
    $region4: #{tpu_custom_call.1} parent=1 // pred_region
      %s22 = ssub.s32 1280, 1280
      %23 = vsyncadd [#allocation3], %s22
      %s24 = sshll.u32 [#allocation2], 4
      %s25 = int_to_ptr.vmem [resolvable:$true] %s24
      %30 = dma.hbm_to_vmem [thread:$0]  %s0, 1280, %s25, [#allocation3], 256, 256, 16
    $region5: #{tpu_custom_call.1} parent=1 // pred_fallthru
      _
    // Predicated region
    $region6: #{tpu_custom_call.1} parent=1 // pred_check
      _
    $region7: #{tpu_custom_call.1} parent=1 // pred_check_branch
      %32 = sbr.rel (0) target = $region9
    $region8: #{tpu_custom_call.1} parent=1 // pred_region
      %s34 = ssub.s32 1280, 1280
      %35 = vsyncadd [#allocation6], %s34
      %s36 = sshll.u32 [#allocation5], 4
      %s37 = int_to_ptr.vmem [resolvable:$true] %s36
      %42 = dma.hbm_to_vmem [thread:$0]  %s1, 1280, %s37, [#allocation6], 256, 256, 16
    $region9: #{tpu_custom_call.1} parent=1 // pred_fallthru
      _
    // Predicated region
    $region10: #{tpu_custom_call.1} parent=1 // pred_check
      _
    $region11: #{tpu_custom_call.1} parent=1 // pred_check_branch
      %44 = sbr.rel (0) target = $region13
    $region12: #{tpu_custom_call.1} parent=1 // pred_region
      %s46 = ssub.s32 1280, 1280
      %47 = vsyncadd [#allocation6], %s46
      %s48 = sshll.u32 [#allocation7], 4
      %s49 = int_to_ptr.vmem [resolvable:$true] %s48
      %54 = dma.hbm_to_vmem [thread:$0]  %s2, 1280, %s49, [#allocation6], 256, 256, 16
    $region13: #{tpu_custom_call.1} parent=1 // pred_fallthru
      _
    // Predicated region
    $region14: #{tpu_custom_call.1} parent=1 // pred_check
      _
    $region15: #{tpu_custom_call.1} parent=1 // pred_check_branch
      %56 = sbr.rel (0) target = $region17
    $region16: #{tpu_custom_call.1} parent=1 // pred_region
      %s58 = ssub.s32 1280, 1280
      %59 = vsyncadd [#allocation9], %s58
      %s60 = sshll.u32 [#allocation8], 4
      %s61 = int_to_ptr.vmem [resolvable:$true] %s60
      %66 = dma.hbm_to_vmem [thread:$0]  %s3, 1280, %s61, [#allocation9], 256, 256, 16
    $region17: #{tpu_custom_call.1} parent=1 // pred_fallthru
      _
    // Predicated region
    $region18: #{tpu_custom_call.1} parent=1 // pred_check
      _
    $region19: #{tpu_custom_call.1} parent=1 // pred_check_branch
      %68 = sbr.rel (0) target = $region21
    $region20: #{tpu_custom_call.1} parent=1 // pred_region
      %s70 = ssub.s32 1280, 1280
      %71 = vsyncadd [#allocation9], %s70
      %s72 = sshll.u32 [#allocation10], 4
      %s73 = int_to_ptr.vmem [resolvable:$true] %s72
      %78 = dma.hbm_to_vmem [thread:$0]  %s4, 1280, %s73, [#allocation9], 256, 256, 16
    $region21: #{tpu_custom_call.1} parent=1 // pred_fallthru
      _
    // Predicated region
    $region22: #{tpu_custom_call.1} parent=1 // pred_check
      _
    $region23: #{tpu_custom_call.1} parent=1 // pred_check_branch
      %80 = sbr.rel (0) target = $region25
    $region24: #{tpu_custom_call.1} parent=1 // pred_region
      %s82 = ssub.s32 1280, 1280
      %83 = vsyncadd [#allocation12], %s82
      %s84 = sshll.u32 [#allocation11], 4
      %s85 = int_to_ptr.vmem [resolvable:$true] %s84
      %90 = dma.hbm_to_vmem [thread:$0]  %s5, 1280, %s85, [#allocation12], 256, 256, 16
    $region25: #{tpu_custom_call.1} parent=1 // pred_fallthru
      _
    // Predicated region
    $region26: #{tpu_custom_call.1} parent=1 // pred_check
      _
    $region27: #{tpu_custom_call.1} parent=1 // pred_check_branch
      %92 = sbr.rel (0) target = $region29
    $region28: #{tpu_custom_call.1} parent=1 // pred_region
      %93 = dma.done [#allocation3], 1280
    $region29: #{tpu_custom_call.1} parent=1 // pred_fallthru
      _
    // Predicated region
    $region30: #{tpu_custom_call.1} parent=1 // pred_check
      _
    $region31: #{tpu_custom_call.1} parent=1 // pred_check_branch
      %95 = sbr.rel (0) target = $region33
    $region32: #{tpu_custom_call.1} parent=1 // pred_region
      %96 = dma.done [#allocation6], 1280
    $region33: #{tpu_custom_call.1} parent=1 // pred_fallthru
      _
    // Predicated region
    $region34: #{tpu_custom_call.1} parent=1 // pred_check
      _
    $region35: #{tpu_custom_call.1} parent=1 // pred_check_branch
      %98 = sbr.rel (0) target = $region37
    $region36: #{tpu_custom_call.1} parent=1 // pred_region
      %99 = dma.done [#allocation6], 1280
    $region37: #{tpu_custom_call.1} parent=1 // pred_fallthru
      _
    // Predicated region
    $region38: #{tpu_custom_call.1} parent=1 // pred_check
      _
    $region39: #{tpu_custom_call.1} parent=1 // pred_check_branch
      %101 = sbr.rel (0) target = $region41
    $region40: #{tpu_custom_call.1} parent=1 // pred_region
      %102 = dma.done [#allocation9], 1280
    $region41: #{tpu_custom_call.1} parent=1 // pred_fallthru
      _
    // Predicated region
    $region42: #{tpu_custom_call.1} parent=1 // pred_check
      _
    $region43: #{tpu_custom_call.1} parent=1 // pred_check_branch
      %104 = sbr.rel (0) target = $region45
    $region44: #{tpu_custom_call.1} parent=1 // pred_region
      %105 = dma.done [#allocation9], 1280
    $region45: #{tpu_custom_call.1} parent=1 // pred_fallthru
      _
    // Predicated region
    $region46: #{tpu_custom_call.1} parent=1 // pred_check
      _
    $region47: #{tpu_custom_call.1} parent=1 // pred_check_branch
      %107 = sbr.rel (0) target = $region49
    $region48: #{tpu_custom_call.1} parent=1 // pred_region
      %108 = dma.done [#allocation12], 1280
    $region49: #{tpu_custom_call.1} parent=1 // pred_fallthru
      _
    %s109 = smul.u32 0, 40
    %s110 = smul.u32 0, 256
    %v111 = vlaneseq
    %v112 = vshrl.u32 %v111, 7
    %v113 = vadd.s32 %v112, 8
    %v114 = vadd.s32 %v112, 16
    %v115 = vadd.s32 %v112, 24
    %v116 = vadd.s32 %v112, 32
    %v117 = vstv %s109
    %v118 = vadd.s32 %v112, %v117
    %v119 = vadd.s32 %v113, %v117
    %v120 = vadd.s32 %v114, %v117
    %v121 = vadd.s32 %v115, %v117
    %v122 = vadd.s32 %v116, %v117
    %v123 = vlaneseq
    %v124 = vand.u32 %v123, 127
    %v125 = vadd.s32 %v124, 128
    %v126 = vstv %s110
    %v127 = vadd.s32 %v124, %v126
    %v128 = vadd.s32 %v125, %v126
    %vm129 = vcmp.lt.s32.totalorder %v118, 40
    %vm130 = vcmp.lt.s32.totalorder %v119, 40
    %vm131 = vcmp.lt.s32.totalorder %v120, 40
    %vm132 = vcmp.lt.s32.totalorder %v121, 40
    %vm133 = vcmp.lt.s32.totalorder %v122, 40
    %vm134 = vcmp.lt.s32.totalorder %v127, 256
    %vm135 = vcmp.lt.s32.totalorder %v128, 256
    %vm136 = vmand %vm129, %vm134
    %vm137 = vmand %vm129, %vm135
    %vm138 = vmand %vm130, %vm134
    %vm139 = vmand %vm130, %vm135
    %vm140 = vmand %vm131, %vm134
    %vm141 = vmand %vm131, %vm135
    %vm142 = vmand %vm132, %vm134
    %vm143 = vmand %vm132, %vm135
    %vm144 = vmand %vm133, %vm134
    %vm145 = vmand %vm133, %vm135
    %v146 = vld [vmem:[#allocation10] sm:$0xff]
    %v147 = vld [vmem:[#allocation10 + $0x8] sm:$0xff]
    %v148 = vld [vmem:[#allocation10 + $0x10] sm:$0xff]
    %v149 = vld [vmem:[#allocation10 + $0x18] sm:$0xff]
    %v150 = vld [vmem:[#allocation10 + $0x20] sm:$0xff]
    %v151 = vld [vmem:[#allocation10 + $0x28] sm:$0xff]
    %v152 = vld [vmem:[#allocation10 + $0x30] sm:$0xff]
    %v153 = vld [vmem:[#allocation10 + $0x38] sm:$0xff]
    %v154 = vld [vmem:[#allocation10 + $0x40] sm:$0xff]
    %v155 = vld [vmem:[#allocation10 + $0x48] sm:$0xff]
    %v156 = vld [vmem:[#allocation11] sm:$0xff]
    %v157 = vld [vmem:[#allocation11 + $0x8] sm:$0xff]
    %v158 = vld [vmem:[#allocation11 + $0x10] sm:$0xff]
    %v159 = vld [vmem:[#allocation11 + $0x18] sm:$0xff]
    %v160 = vld [vmem:[#allocation11 + $0x20] sm:$0xff]
    %v161 = vld [vmem:[#allocation11 + $0x28] sm:$0xff]
    %v162 = vld [vmem:[#allocation11 + $0x30] sm:$0xff]
    %v163 = vld [vmem:[#allocation11 + $0x38] sm:$0xff]
    %v164 = vld [vmem:[#allocation11 + $0x40] sm:$0xff]
    %v165 = vld [vmem:[#allocation11 + $0x48] sm:$0xff]
    %v166 = vmul.f32 %v146, %v156
    %v167 = vmul.f32 %v147, %v157
    %v168 = vmul.f32 %v148, %v158
    %v169 = vmul.f32 %v149, %v159
    %v170 = vmul.f32 %v150, %v160
    %v171 = vmul.f32 %v151, %v161
    %v172 = vmul.f32 %v152, %v162
    %v173 = vmul.f32 %v153, %v163
    %v174 = vmul.f32 %v154, %v164
    %v175 = vmul.f32 %v155, %v165
    %v176 = vld [vmem:[#allocation2] sm:$0xff]
    %v177 = vld [vmem:[#allocation2 + $0x8] sm:$0xff]
    %v178 = vld [vmem:[#allocation2 + $0x10] sm:$0xff]
    %v179 = vld [vmem:[#allocation2 + $0x18] sm:$0xff]
    %v180 = vld [vmem:[#allocation2 + $0x20] sm:$0xff]
    %v181 = vld [vmem:[#allocation2 + $0x28] sm:$0xff]
    %v182 = vld [vmem:[#allocation2 + $0x30] sm:$0xff]
    %v183 = vld [vmem:[#allocation2 + $0x38] sm:$0xff]
    %v184 = vld [vmem:[#allocation2 + $0x40] sm:$0xff]
    %v185 = vld [vmem:[#allocation2 + $0x48] sm:$0xff]
    %v186 = vmul.f32 %v176, %v166
    %v187 = vmul.f32 %v177, %v167
    %v188 = vmul.f32 %v178, %v168
    %v189 = vmul.f32 %v179, %v169
    %v190 = vmul.f32 %v180, %v170
    %v191 = vmul.f32 %v181, %v171
    %v192 = vmul.f32 %v182, %v172
    %v193 = vmul.f32 %v183, %v173
    %v194 = vmul.f32 %v184, %v174
    %v195 = vmul.f32 %v185, %v175
    %v196 = vld [vmem:[#allocation5] sm:$0xff]
    %v197 = vld [vmem:[#allocation5 + $0x8] sm:$0xff]
    %v198 = vld [vmem:[#allocation5 + $0x10] sm:$0xff]
    %v199 = vld [vmem:[#allocation5 + $0x18] sm:$0xff]
    %v200 = vld [vmem:[#allocation5 + $0x20] sm:$0xff]
    %v201 = vld [vmem:[#allocation5 + $0x28] sm:$0xff]
    %v202 = vld [vmem:[#allocation5 + $0x30] sm:$0xff]
    %v203 = vld [vmem:[#allocation5 + $0x38] sm:$0xff]
    %v204 = vld [vmem:[#allocation5 + $0x40] sm:$0xff]
    %v205 = vld [vmem:[#allocation5 + $0x48] sm:$0xff]
    %v206 = vmul.f32 %v196, %v166
    %v207 = vmul.f32 %v197, %v167
    %v208 = vmul.f32 %v198, %v168
    %v209 = vmul.f32 %v199, %v169
    %v210 = vmul.f32 %v200, %v170
    %v211 = vmul.f32 %v201, %v171
    %v212 = vmul.f32 %v202, %v172
    %v213 = vmul.f32 %v203, %v173
    %v214 = vmul.f32 %v204, %v174
    %v215 = vmul.f32 %v205, %v175
    %v216 = vlog2.pop %v186
    %v217 = vmul.f32 %v216, 0.6931472
    %v218 = vlog2.pop %v187
    %v219 = vmul.f32 %v218, 0.6931472
    %v220 = vlog2.pop %v188
    %v221 = vmul.f32 %v220, 0.6931472
    %v222 = vlog2.pop %v189
    %v223 = vmul.f32 %v222, 0.6931472
    %v224 = vlog2.pop %v190
    %v225 = vmul.f32 %v224, 0.6931472
    %v226 = vlog2.pop %v191
    %v227 = vmul.f32 %v226, 0.6931472
    %v228 = vlog2.pop %v192
    %v229 = vmul.f32 %v228, 0.6931472
    %v230 = vlog2.pop %v193
    %v231 = vmul.f32 %v230, 0.6931472
    %v232 = vlog2.pop %v194
    %v233 = vmul.f32 %v232, 0.6931472
    %v234 = vlog2.pop %v195
    %v235 = vmul.f32 %v234, 0.6931472
    %v236 = vmax.f32 %v217, -100.0
    %v237 = vmax.f32 %v219, -100.0
    %v238 = vmax.f32 %v221, -100.0
    %v239 = vmax.f32 %v223, -100.0
    %v240 = vmax.f32 %v225, -100.0
    %v241 = vmax.f32 %v227, -100.0
    %v242 = vmax.f32 %v229, -100.0
    %v243 = vmax.f32 %v231, -100.0
    %v244 = vmax.f32 %v233, -100.0
    %v245 = vmax.f32 %v235, -100.0
    %v246 = vsub.f32 1.0, %v186
    %v247 = vsub.f32 1.0, %v187
    %v248 = vsub.f32 1.0, %v188
    %v249 = vsub.f32 1.0, %v189
    %v250 = vsub.f32 1.0, %v190
    %v251 = vsub.f32 1.0, %v191
    %v252 = vsub.f32 1.0, %v192
    %v253 = vsub.f32 1.0, %v193
    %v254 = vsub.f32 1.0, %v194
    %v255 = vsub.f32 1.0, %v195
    %v256 = vlog2.pop %v246
    %v257 = vmul.f32 %v256, 0.6931472
    %v258 = vlog2.pop %v247
    %v259 = vmul.f32 %v258, 0.6931472
    %v260 = vlog2.pop %v248
    %v261 = vmul.f32 %v260, 0.6931472
    %v262 = vlog2.pop %v249
    %v263 = vmul.f32 %v262, 0.6931472
    %v264 = vlog2.pop %v250
    %v265 = vmul.f32 %v264, 0.6931472
    %v266 = vlog2.pop %v251
    %v267 = vmul.f32 %v266, 0.6931472
    %v268 = vlog2.pop %v252
    %v269 = vmul.f32 %v268, 0.6931472
    %v270 = vlog2.pop %v253
    %v271 = vmul.f32 %v270, 0.6931472
    %v272 = vlog2.pop %v254
    %v273 = vmul.f32 %v272, 0.6931472
    %v274 = vlog2.pop %v255
    %v275 = vmul.f32 %v274, 0.6931472
    %v276 = vmax.f32 %v257, -100.0
    %v277 = vmax.f32 %v259, -100.0
    %v278 = vmax.f32 %v261, -100.0
    %v279 = vmax.f32 %v263, -100.0
    %v280 = vmax.f32 %v265, -100.0
    %v281 = vmax.f32 %v267, -100.0
    %v282 = vmax.f32 %v269, -100.0
    %v283 = vmax.f32 %v271, -100.0
    %v284 = vmax.f32 %v273, -100.0
    %v285 = vmax.f32 %v275, -100.0
    %v286 = vmul.f32 %v206, %v236
    %v287 = vmul.f32 %v207, %v237
    %v288 = vmul.f32 %v208, %v238
    %v289 = vmul.f32 %v209, %v239
    %v290 = vmul.f32 %v210, %v240
    %v291 = vmul.f32 %v211, %v241
    %v292 = vmul.f32 %v212, %v242
    %v293 = vmul.f32 %v213, %v243
    %v294 = vmul.f32 %v214, %v244
    %v295 = vmul.f32 %v215, %v245
    %v296 = vsub.f32 1.0, %v206
    %v297 = vsub.f32 1.0, %v207
    %v298 = vsub.f32 1.0, %v208
    %v299 = vsub.f32 1.0, %v209
    %v300 = vsub.f32 1.0, %v210
    %v301 = vsub.f32 1.0, %v211
    %v302 = vsub.f32 1.0, %v212
    %v303 = vsub.f32 1.0, %v213
    %v304 = vsub.f32 1.0, %v214
    %v305 = vsub.f32 1.0, %v215
    %v306 = vmul.f32 %v296, %v276
    %v307 = vmul.f32 %v297, %v277
    %v308 = vmul.f32 %v298, %v278
    %v309 = vmul.f32 %v299, %v279
    %v310 = vmul.f32 %v300, %v280
    %v311 = vmul.f32 %v301, %v281
    %v312 = vmul.f32 %v302, %v282
    %v313 = vmul.f32 %v303, %v283
    %v314 = vmul.f32 %v304, %v284
    %v315 = vmul.f32 %v305, %v285
    %v316 = vadd.f32 %v286, %v306
    %v317 = vadd.f32 %v287, %v307
    %v318 = vadd.f32 %v288, %v308
    %v319 = vadd.f32 %v289, %v309
    %v320 = vadd.f32 %v290, %v310
    %v321 = vadd.f32 %v291, %v311
    %v322 = vadd.f32 %v292, %v312
    %v323 = vadd.f32 %v293, %v313
    %v324 = vadd.f32 %v294, %v314
    %v325 = vadd.f32 %v295, %v315
    %v326 = vsub.f32 0.0, %v316
    %v327 = vsub.f32 0.0, %v317
    %v328 = vsub.f32 0.0, %v318
    %v329 = vsub.f32 0.0, %v319
    %v330 = vsub.f32 0.0, %v320
    %v331 = vsub.f32 0.0, %v321
    %v332 = vsub.f32 0.0, %v322
    %v333 = vsub.f32 0.0, %v323
    %v334 = vsub.f32 0.0, %v324
    %v335 = vsub.f32 0.0, %v325
    %v336 = vsel %vm136, %v326, 0.0
    %v337 = vsel %vm137, %v327, 0.0
    %v338 = vsel %vm138, %v328, 0.0
    %v339 = vsel %vm139, %v329, 0.0
    %v340 = vsel %vm140, %v330, 0.0
    %v341 = vsel %vm141, %v331, 0.0
    %v342 = vsel %vm142, %v332, 0.0
    %v343 = vsel %vm143, %v333, 0.0
    %v344 = vsel %vm144, %v334, 0.0
    %v345 = vsel %vm145, %v335, 0.0
    %v346 = vld [vmem:[#allocation7] sm:$0xff]
    %v347 = vld [vmem:[#allocation7 + $0x8] sm:$0xff]
    %v348 = vld [vmem:[#allocation7 + $0x10] sm:$0xff]
    %v349 = vld [vmem:[#allocation7 + $0x18] sm:$0xff]
    %v350 = vld [vmem:[#allocation7 + $0x20] sm:$0xff]
    %v351 = vld [vmem:[#allocation7 + $0x28] sm:$0xff]
    %v352 = vld [vmem:[#allocation7 + $0x30] sm:$0xff]
    %v353 = vld [vmem:[#allocation7 + $0x38] sm:$0xff]
    %v354 = vld [vmem:[#allocation7 + $0x40] sm:$0xff]
    %v355 = vld [vmem:[#allocation7 + $0x48] sm:$0xff]
    %v356 = vld [vmem:[#allocation8] sm:$0xff]
    %v357 = vld [vmem:[#allocation8 + $0x8] sm:$0xff]
    %v358 = vld [vmem:[#allocation8 + $0x10] sm:$0xff]
    %v359 = vld [vmem:[#allocation8 + $0x18] sm:$0xff]
    %v360 = vld [vmem:[#allocation8 + $0x20] sm:$0xff]
    %v361 = vld [vmem:[#allocation8 + $0x28] sm:$0xff]
    %v362 = vld [vmem:[#allocation8 + $0x30] sm:$0xff]
    %v363 = vld [vmem:[#allocation8 + $0x38] sm:$0xff]
    %v364 = vld [vmem:[#allocation8 + $0x40] sm:$0xff]
    %v365 = vld [vmem:[#allocation8 + $0x48] sm:$0xff]
    %v366 = vlog2.pop %v356
    %v367 = vmul.f32 %v366, 0.6931472
    %v368 = vlog2.pop %v357
    %v369 = vmul.f32 %v368, 0.6931472
    %v370 = vlog2.pop %v358
    %v371 = vmul.f32 %v370, 0.6931472
    %v372 = vlog2.pop %v359
    %v373 = vmul.f32 %v372, 0.6931472
    %v374 = vlog2.pop %v360
    %v375 = vmul.f32 %v374, 0.6931472
    %v376 = vlog2.pop %v361
    %v377 = vmul.f32 %v376, 0.6931472
    %v378 = vlog2.pop %v362
    %v379 = vmul.f32 %v378, 0.6931472
    %v380 = vlog2.pop %v363
    %v381 = vmul.f32 %v380, 0.6931472
    %v382 = vlog2.pop %v364
    %v383 = vmul.f32 %v382, 0.6931472
    %v384 = vlog2.pop %v365
    %v385 = vmul.f32 %v384, 0.6931472
    %v386 = vmul.f32 %v367, 2.0
    %v387 = vmul.f32 %v369, 2.0
    %v388 = vmul.f32 %v371, 2.0
    %v389 = vmul.f32 %v373, 2.0
    %v390 = vmul.f32 %v375, 2.0
    %v391 = vmul.f32 %v377, 2.0
    %v392 = vmul.f32 %v379, 2.0
    %v393 = vmul.f32 %v381, 2.0
    %v394 = vmul.f32 %v383, 2.0
    %v395 = vmul.f32 %v385, 2.0
    %v396 = vadd.f32 %v386, 1.0
    %v397 = vadd.f32 %v387, 1.0
    %v398 = vadd.f32 %v388, 1.0
    %v399 = vadd.f32 %v389, 1.0
    %v400 = vadd.f32 %v390, 1.0
    %v401 = vadd.f32 %v391, 1.0
    %v402 = vadd.f32 %v392, 1.0
    %v403 = vadd.f32 %v393, 1.0
    %v404 = vadd.f32 %v394, 1.0
    %v405 = vadd.f32 %v395, 1.0
    %v406 = vmul.f32 %v346, %v346
    %v407 = vmul.f32 %v347, %v347
    %v408 = vmul.f32 %v348, %v348
    %v409 = vmul.f32 %v349, %v349
    %v410 = vmul.f32 %v350, %v350
    %v411 = vmul.f32 %v351, %v351
    %v412 = vmul.f32 %v352, %v352
    %v413 = vmul.f32 %v353, %v353
    %v414 = vmul.f32 %v354, %v354
    %v415 = vmul.f32 %v355, %v355
    %v416 = vsub.f32 %v396, %v406
    %v417 = vsub.f32 %v397, %v407
    %v418 = vsub.f32 %v398, %v408
    %v419 = vsub.f32 %v399, %v409
    %v420 = vsub.f32 %v400, %v410
    %v421 = vsub.f32 %v401, %v411
    %v422 = vsub.f32 %v402, %v412
    %v423 = vsub.f32 %v403, %v413
    %v424 = vsub.f32 %v404, %v414
    %v425 = vsub.f32 %v405, %v415
    %v426 = vmul.f32 %v356, %v356
    %v427 = vmul.f32 %v357, %v357
    %v428 = vmul.f32 %v358, %v358
    %v429 = vmul.f32 %v359, %v359
    %v430 = vmul.f32 %v360, %v360
    %v431 = vmul.f32 %v361, %v361
    %v432 = vmul.f32 %v362, %v362
    %v433 = vmul.f32 %v363, %v363
    %v434 = vmul.f32 %v364, %v364
    %v435 = vmul.f32 %v365, %v365
    %v436 = vsub.f32 %v416, %v426
    %v437 = vsub.f32 %v417, %v427
    %v438 = vsub.f32 %v418, %v428
    %v439 = vsub.f32 %v419, %v429
    %v440 = vsub.f32 %v420, %v430
    %v441 = vsub.f32 %v421, %v431
    %v442 = vsub.f32 %v422, %v432
    %v443 = vsub.f32 %v423, %v433
    %v444 = vsub.f32 %v424, %v434
    %v445 = vsub.f32 %v425, %v435
    %v446 = vmul.f32 %v436, %v146
    %v447 = vmul.f32 %v437, %v147
    %v448 = vmul.f32 %v438, %v148
    %v449 = vmul.f32 %v439, %v149
    %v450 = vmul.f32 %v440, %v150
    %v451 = vmul.f32 %v441, %v151
    %v452 = vmul.f32 %v442, %v152
    %v453 = vmul.f32 %v443, %v153
    %v454 = vmul.f32 %v444, %v154
    %v455 = vmul.f32 %v445, %v155
    %v456 = vsel %vm136, %v446, 0.0
    %v457 = vsel %vm137, %v447, 0.0
    %v458 = vsel %vm138, %v448, 0.0
    %v459 = vsel %vm139, %v449, 0.0
    %v460 = vsel %vm140, %v450, 0.0
    %v461 = vsel %vm141, %v451, 0.0
    %v462 = vsel %vm142, %v452, 0.0
    %v463 = vsel %vm143, %v453, 0.0
    %v464 = vsel %vm144, %v454, 0.0
    %v465 = vsel %vm145, %v455, 0.0
    %v466 = vadd.f32 %v336, %v338
    %v467 = vadd.f32 %v466, %v340
    %v468 = vadd.f32 %v467, %v342
    %v469 = vadd.f32 %v468, %v344
    %v470 = vadd.f32 %v337, %v339
    %v471 = vadd.f32 %v470, %v341
    %v472 = vadd.f32 %v471, %v343
    %v473 = vadd.f32 %v472, %v345
    %474 = vst [vmem:[#allocation13] sm:$0xff] %v469
    %475 = vst [vmem:[#allocation13 + $0x8] sm:$0xff] %v473
    %v476 = vadd.f32 %v456, %v458
    %v477 = vadd.f32 %v476, %v460
    %v478 = vadd.f32 %v477, %v462
    %v479 = vadd.f32 %v478, %v464
    %v480 = vadd.f32 %v457, %v459
    %v481 = vadd.f32 %v480, %v461
    %v482 = vadd.f32 %v481, %v463
    %v483 = vadd.f32 %v482, %v465
    %484 = vst [vmem:[#allocation14] sm:$0xff] %v479
    %485 = vst [vmem:[#allocation14 + $0x8] sm:$0xff] %v483
    // Predicated region
    $region50: #{tpu_custom_call.1} parent=1 // pred_check
      _
    $region51: #{tpu_custom_call.1} parent=1 // pred_check_branch
      %487 = sbr.rel (0) target = $region53
    $region52: #{tpu_custom_call.1} parent=1 // pred_region
      %s489 = ssub.s32 256, 256
      %490 = vsyncadd [#allocation4], %s489
      %s492 = sshll.u32 [#allocation13], 4
      %s493 = int_to_ptr.vmem [resolvable:$true] %s492
      %495 = dma.vmem_to_hbm [thread:$0]  %s493, 256, %s6, [#allocation4]
    $region53: #{tpu_custom_call.1} parent=1 // pred_fallthru
      _
    // Predicated region
    $region54: #{tpu_custom_call.1} parent=1 // pred_check
      _
    $region55: #{tpu_custom_call.1} parent=1 // pred_check_branch
      %497 = sbr.rel (0) target = $region57
    $region56: #{tpu_custom_call.1} parent=1 // pred_region
      %s499 = ssub.s32 256, 256
      %500 = vsyncadd [#allocation15], %s499
      %s502 = sshll.u32 [#allocation14], 4
      %s503 = int_to_ptr.vmem [resolvable:$true] %s502
      %505 = dma.vmem_to_hbm [thread:$0]  %s503, 256, %s7, [#allocation15]
    $region57: #{tpu_custom_call.1} parent=1 // pred_fallthru
      _
    // Predicated region
    $region58: #{tpu_custom_call.1} parent=1 // pred_check
      _
    $region59: #{tpu_custom_call.1} parent=1 // pred_check_branch
      %507 = sbr.rel (0) target = $region61
    $region60: #{tpu_custom_call.1} parent=1 // pred_region
      %508 = dma.done [#allocation4], 256
    $region61: #{tpu_custom_call.1} parent=1 // pred_fallthru
      _
    // Predicated region
    $region62: #{tpu_custom_call.1} parent=1 // pred_check
      _
    $region63: #{tpu_custom_call.1} parent=1 // pred_check_branch
      %510 = sbr.rel (0) target = $region65
    $region64: #{tpu_custom_call.1} parent=1 // pred_region
      %511 = dma.done [#allocation15], 256
    $region65: #{tpu_custom_call.1} parent=1 // pred_fallthru
      _
    %512 = vsyncpa [#allocation3], 1
    %513 = vsyncpa [#allocation6], 1
    %514 = vsyncpa [#allocation9], 1
    %515 = vsyncpa [#allocation12], 1
    %516 = vsyncpa [#allocation4], 1
    %517 = vsyncpa [#allocation15], 1

</llo_original>
